<compile_context>
chip_gen: v6e
topology: v6e:2x2x1
jax: 0.10.0
libtpu: 0.0.40
codegen_flags: <defaults>
</compile_context>

<pallas_src>
import functools

import jax
import jax.numpy as jnp
from jax.experimental import pallas as pl
from jax.experimental.pallas import tpu as pltpu

HIDDEN = 64          # per-branch hidden width (matches the PyTorch module)
FUSED = 2 * HIDDEN   # 128: fused [actor | critic] hidden width


def _out_width(action_dim):
    """Narrow HBM output width: action_dim prob lanes + 1 value lane, padded to 8."""
    return max(8, ((action_dim + 1 + 7) // 8) * 8)


def _make_kernel(action_dim):
    def kernel(x_ref, w1_ref, b1_ref, w2_ref, b2_ref, w3_ref, b3_ref, out_ref):
        x = x_ref[...]

        # Fused layer 1 + 2 (ReLU), both branches side by side in lanes.
        h = jnp.dot(x, w1_ref[...], preferred_element_type=jnp.float32) + b1_ref[...]
        h = jnp.maximum(h, 0.0)
        h = jnp.dot(h, w2_ref[...], preferred_element_type=jnp.float32) + b2_ref[...]
        h = jnp.maximum(h, 0.0)

        # Fused layer 3, already narrowed to OUT_W lanes:
        #   lanes [0, A) = actor logits, lane A = critic value, lanes > A = 0
        #   (zero only because the w3/b3 padding columns are exactly zero).
        fused = jnp.dot(h, w3_ref[...], preferred_element_type=jnp.float32) + b3_ref[...]

        # Masked, numerically-stable softmax over the actor lanes.  Note: the
        # narrow last dim does not reduce vreg/VPU work (same vreg count as a
        # 128-lane slab); it exists purely to shrink HBM writeback bytes.
        lane = jax.lax.broadcasted_iota(jnp.int32, fused.shape, 1)
        actor = lane < action_dim
        logits = jnp.where(actor, fused, jnp.float32(-1e30))
        m = jnp.max(logits, axis=-1, keepdims=True)
        e = jnp.exp(logits - m)                        # masked lanes underflow to 0
        denom = jnp.sum(e, axis=-1, keepdims=True)

        # EUP reciprocal + one Newton step (full f32 accuracy; EUP slot is
        # otherwise idle in this kernel).
        inv = pl.reciprocal(denom, approx=True)
        inv = inv * (2.0 - denom * inv)
        probs = e * inv

        # Narrow lane-dense output: probs | value (raw fused) | zeros.
        out_ref[...] = jnp.where(actor, probs, fused)

    return kernel


def pack_params(params, action_dim):
    """One-time packing of PyTorch-style per-branch weights into fused MXU
    operands.  Weights are stored as (in_features, out_features)."""
    H, F = HIDDEN, FUSED
    out_w = _out_width(action_dim)
    assert action_dim + 1 <= out_w

    w1 = jnp.concatenate([params["wa1"], params["wc1"]], axis=1)      # (S, 128)
    b1 = jnp.concatenate([params["ba1"], params["bc1"]], axis=1)      # (1, 128)

    w2 = jnp.zeros((F, F), jnp.float32)                               # block-diag
    w2 = w2.at[:H, :H].set(params["wa2"]).at[H:, H:].set(params["wc2"])
    b2 = jnp.concatenate([params["ba2"], params["bc2"]], axis=1)      # (1, 128)

    # Layer-3 output IS the narrow HBM slab.  Columns > action_dim must stay
    # exactly zero (kernel relies on it for the zero pad lanes); column
    # `action_dim` is the critic value and is read back as raw `fused`.
    w3 = jnp.zeros((F, out_w), jnp.float32)
    w3 = w3.at[:H, :action_dim].set(params["wa3"])
    w3 = w3.at[H:, action_dim:action_dim + 1].set(params["wc3"])
    b3 = jnp.zeros((1, out_w), jnp.float32)
    b3 = b3.at[:, :action_dim].set(params["ba3"])
    b3 = b3.at[:, action_dim:action_dim + 1].set(params["bc3"])

    return dict(w1=w1, b1=b1, w2=w2, b2=b2, w3=w3, b3=b3)


def _pick_tile(batch, tb, min_tiles=4):
    """Largest tile <= tb (amortizes ~0.35us/grid-step), but when the batch is
    large enough, keep >= min_tiles grid steps so the "parallel" batch axis is
    sharded across both v7x TensorCores and the pipeline stays deep."""
    cand = max(1, min(tb, batch))
    target = -(-batch // min_tiles)          # cdiv(batch, min_tiles)
    if target >= 8:
        cand = min(cand, target)
    return cand


def _vmem_limit_bytes(tb, state_dim, out_w):
    f32 = 4
    io = 2 * f32 * tb * (state_dim + out_w)                       # double-buffered I/O
    weights = f32 * ((state_dim + 2) * FUSED + FUSED * FUSED + (FUSED + 1) * out_w)
    temps = 6 * f32 * tb * FUSED                                  # in-kernel (TB,128) temps
    need = 2 * (io + weights + temps)                             # 2x headroom
    # Cap at 48 MiB: safe on v7x's 64 MiB physical VMEM; v5e/v6e (128 MiB)
    # would tolerate more, but the default tb=4096 never needs it.
    return int(min(48 << 20, max(16 << 20, need)))


@functools.partial(jax.jit, static_argnames=("action_dim", "tb"))
def actor_critic_forward(state, packed, action_dim, tb=4096):
    """state: (B, state_dim) f32.  packed: output of pack_params.
    Returns (action_probs (B, action_dim), value (B, 1))."""
    B, S = state.shape
    out_w = _out_width(action_dim)

    TB = _pick_tile(B, tb)
    if TB >= B:
        TB, Bp = B, B                        # single full-batch tile: no pad, no copy
    else:
        TB = ((TB + 7) // 8) * 8             # multi-tile blocks need a sublane multiple
        Bp = -(-B // TB) * TB
    grid = (Bp // TB,)
    if Bp != B:
        # Pads at most TB-1 rows; callers can pass batch sizes that are tile
        # multiples to skip this extra HBM copy entirely.
        state = jnp.pad(state, ((0, Bp - B), (0, 0)))

    def const_spec(shape):
        # Constant index map + single buffer: weights are DMA'd once and stay
        # VMEM-resident; no useless double-buffering / warm-up DMAs.
        return pl.BlockSpec(shape, lambda i: (0, 0), pipeline_mode=pl.Buffered(1))

    out = pl.pallas_call(
        _make_kernel(action_dim),
        out_shape=jax.ShapeDtypeStruct((Bp, out_w), jnp.float32),
        grid=grid,
        in_specs=[
            pl.BlockSpec((TB, S), lambda i: (i, 0)),
            const_spec(packed["w1"].shape), const_spec(packed["b1"].shape),
            const_spec(packed["w2"].shape), const_spec(packed["b2"].shape),
            const_spec(packed["w3"].shape), const_spec(packed["b3"].shape),
        ],
        out_specs=pl.BlockSpec((TB, out_w), lambda i: (i, 0)),
        compiler_params=pltpu.CompilerParams(
            dimension_semantics=("parallel",),          # shard batch over TCs (v7x)
            vmem_limit_bytes=_vmem_limit_bytes(TB, S, out_w),
        ),
    )(state, packed["w1"], packed["b1"], packed["w2"], packed["b2"],
      packed["w3"], packed["b3"])

    # Narrow output slab -> contiguous, nearly-free slices.
    probs = out[:B, :action_dim]
    value = out[:B, action_dim:action_dim + 1]
    return probs, value


def init_params(key, state_dim, action_dim):
    """PyTorch-style uniform(-1/sqrt(fan_in), 1/sqrt(fan_in)) init.
    Weights stored as (in_features, out_features)."""
    def linear(key, fan_in, fan_out):
        kw, kb = jax.random.split(key)
        bound = 1.0 / jnp.sqrt(jnp.float32(fan_in))
        w = jax.random.uniform(kw, (fan_in, fan_out), jnp.float32, -bound, bound)
        b = jax.random.uniform(kb, (1, fan_out), jnp.float32, -bound, bound)
        return w, b

    keys = jax.random.split(key, 6)
    wa1, ba1 = linear(keys[0], state_dim, HIDDEN)
    wa2, ba2 = linear(keys[1], HIDDEN, HIDDEN)
    wa3, ba3 = linear(keys[2], HIDDEN, action_dim)
    wc1, bc1 = linear(keys[3], state_dim, HIDDEN)
    wc2, bc2 = linear(keys[4], HIDDEN, HIDDEN)
    wc3, bc3 = linear(keys[5], HIDDEN, 1)
    return dict(
        wa1=wa1, ba1=ba1, wa2=wa2, ba2=ba2, wa3=wa3, ba3=ba3,
        wc1=wc1, bc1=bc1, wc2=wc2, bc2=bc2, wc3=wc3, bc3=bc3,
    )


def _reference_forward(state, p):
    """Pure-JAX reference of the PyTorch module."""
    h = jnp.maximum(state @ p["wa1"] + p["ba1"], 0.0)
    h = jnp.maximum(h @ p["wa2"] + p["ba2"], 0.0)
    logits = h @ p["wa3"] + p["ba3"]
    probs = jax.nn.softmax(logits, axis=-1)
    g = jnp.maximum(state @ p["wc1"] + p["bc1"], 0.0)
    g = jnp.maximum(g @ p["wc2"] + p["bc2"], 0.0)
    value = g @ p["wc3"] + p["bc3"]
    return probs, value


if __name__ == "__main__":
    key = jax.random.PRNGKey(0)
    k_param, k_state1, k_state2, k_state3 = jax.random.split(key, 4)

    state_dim, action_dim = 8, 6
    params = init_params(k_param, state_dim, action_dim)
    packed = pack_params(params, action_dim)

    # --- test 1: small batch, single full-batch tile (no padding path) ---
    batch = 4
    state = jax.random.normal(k_state1, (batch, state_dim), jnp.float32)
    probs, value = actor_critic_forward(state, packed, action_dim)
    probs = jax.block_until_ready(probs)
    value = jax.block_until_ready(value)

    ref_probs, ref_value = _reference_forward(state, params)
    assert probs.shape == (batch, action_dim)
    assert value.shape == (batch, 1)
    assert jnp.allclose(probs, ref_probs, atol=1e-5, rtol=1e-5)
    assert jnp.allclose(value, ref_value, atol=1e-5, rtol=1e-5)
    assert jnp.allclose(jnp.sum(probs, axis=-1), 1.0, atol=1e-5)

    # --- test 2: explicit small tile -> multi-step grid + padded batch ---
    batch2 = 20
    state2 = jax.random.normal(k_state2, (batch2, state_dim), jnp.float32)
    probs2, value2 = actor_critic_forward(state2, packed, action_dim, tb=8)
    probs2 = jax.block_until_ready(probs2)
    value2 = jax.block_until_ready(value2)

    ref_probs2, ref_value2 = _reference_forward(state2, params)
    assert probs2.shape == (batch2, action_dim)
    assert value2.shape == (batch2, 1)
    assert jnp.allclose(probs2, ref_probs2, atol=1e-5, rtol=1e-5)
    assert jnp.allclose(value2, ref_value2, atol=1e-5, rtol=1e-5)

    # --- test 3: default tb, batch large enough to trigger min-tiles capping ---
    batch3 = 300
    state3 = jax.random.normal(k_state3, (batch3, state_dim), jnp.float32)
    probs3, value3 = actor_critic_forward(state3, packed, action_dim)
    probs3 = jax.block_until_ready(probs3)
    value3 = jax.block_until_ready(value3)

    ref_probs3, ref_value3 = _reference_forward(state3, params)
    assert probs3.shape == (batch3, action_dim)
    assert value3.shape == (batch3, 1)
    assert jnp.allclose(probs3, ref_probs3, atol=1e-5, rtol=1e-5)
    assert jnp.allclose(value3, ref_value3, atol=1e-5, rtol=1e-5)

    print("KERNEL_OK")
</pallas_src>

<mosaic_0001>
module attributes {stable_mosaic.version = 11 : i64} {
  func.func @kernel(%arg0: i32, %arg1: memref<4x8xf32, #tpu.memory_space<vmem>>, %arg2: memref<8x128xf32, #tpu.memory_space<vmem>>, %arg3: memref<1x128xf32, #tpu.memory_space<vmem>>, %arg4: memref<128x128xf32, #tpu.memory_space<vmem>>, %arg5: memref<1x128xf32, #tpu.memory_space<vmem>>, %arg6: memref<128x8xf32, #tpu.memory_space<vmem>>, %arg7: memref<1x8xf32, #tpu.memory_space<vmem>>, %arg8: memref<4x8xf32, #tpu.memory_space<vmem>>) attributes {dimension_semantics = [#tpu.dimension_semantics<parallel>], iteration_bounds = array<i64: 1>, scalar_prefetch = 0 : i64, scratch_operands = 0 : i64, tpu.core_type = #tpu.core_type<tc>, window_params = [{transform_indices = @transform_0, window_bounds = array<i64: 4, 8>}, {pipeline_mode = #tpu.pipeline_mode<synchronous>, transform_indices = @transform_1, window_bounds = array<i64: 8, 128>}, {pipeline_mode = #tpu.pipeline_mode<synchronous>, transform_indices = @transform_2, window_bounds = array<i64: 1, 128>}, {pipeline_mode = #tpu.pipeline_mode<synchronous>, transform_indices = @transform_3, window_bounds = array<i64: 128, 128>}, {pipeline_mode = #tpu.pipeline_mode<synchronous>, transform_indices = @transform_4, window_bounds = array<i64: 1, 128>}, {pipeline_mode = #tpu.pipeline_mode<synchronous>, transform_indices = @transform_5, window_bounds = array<i64: 128, 8>}, {pipeline_mode = #tpu.pipeline_mode<synchronous>, transform_indices = @transform_6, window_bounds = array<i64: 1, 8>}, {transform_indices = @transform_7, window_bounds = array<i64: 4, 8>}]} {
    %c0 = arith.constant 0 : index
    %c0_0 = arith.constant 0 : index
    %0 = vector.load %arg1[%c0, %c0_0] : memref<4x8xf32, #tpu.memory_space<vmem>>, vector<4x8xf32>
    %c0_1 = arith.constant 0 : index
    %c0_2 = arith.constant 0 : index
    %1 = vector.load %arg2[%c0_1, %c0_2] : memref<8x128xf32, #tpu.memory_space<vmem>>, vector<8x128xf32>
    %cst = arith.constant dense<0.000000e+00> : vector<4x128xf32>
    %2 = tpu.matmul %0, %1, %cst {dimension_numbers = #tpu.dot_dimension_numbers<[1], [0], [0], [1], [0, 0, 1, 1], [], []>} : vector<4x8xf32>, vector<8x128xf32>, vector<4x128xf32> -> vector<4x128xf32>
    %c0_3 = arith.constant 0 : index
    %c0_4 = arith.constant 0 : index
    %3 = vector.load %arg3[%c0_3, %c0_4] : memref<1x128xf32, #tpu.memory_space<vmem>>, vector<1x128xf32>
    %4 = vector.broadcast %3 : vector<1x128xf32> to vector<4x128xf32>
    %5 = arith.addf %2, %4 : vector<4x128xf32>
    %cst_5 = arith.constant 0.000000e+00 : f32
    %6 = vector.broadcast %cst_5 : f32 to vector<4x128xf32>
    %7 = arith.maximumf %5, %6 : vector<4x128xf32>
    %c0_6 = arith.constant 0 : index
    %c0_7 = arith.constant 0 : index
    %8 = vector.load %arg4[%c0_6, %c0_7] : memref<128x128xf32, #tpu.memory_space<vmem>>, vector<128x128xf32>
    %cst_8 = arith.constant dense<0.000000e+00> : vector<4x128xf32>
    %9 = tpu.matmul %7, %8, %cst_8 {dimension_numbers = #tpu.dot_dimension_numbers<[1], [0], [0], [1], [0, 0, 1, 1], [], []>} : vector<4x128xf32>, vector<128x128xf32>, vector<4x128xf32> -> vector<4x128xf32>
    %c0_9 = arith.constant 0 : index
    %c0_10 = arith.constant 0 : index
    %10 = vector.load %arg5[%c0_9, %c0_10] : memref<1x128xf32, #tpu.memory_space<vmem>>, vector<1x128xf32>
    %11 = vector.broadcast %10 : vector<1x128xf32> to vector<4x128xf32>
    %12 = arith.addf %9, %11 : vector<4x128xf32>
    %cst_11 = arith.constant 0.000000e+00 : f32
    %13 = vector.broadcast %cst_11 : f32 to vector<4x128xf32>
    %14 = arith.maximumf %12, %13 : vector<4x128xf32>
    %c0_12 = arith.constant 0 : index
    %c0_13 = arith.constant 0 : index
    %15 = vector.load %arg6[%c0_12, %c0_13] : memref<128x8xf32, #tpu.memory_space<vmem>>, vector<128x8xf32>
    %cst_14 = arith.constant dense<0.000000e+00> : vector<4x8xf32>
    %16 = tpu.matmul %14, %15, %cst_14 {dimension_numbers = #tpu.dot_dimension_numbers<[1], [0], [0], [1], [0, 0, 1, 1], [], []>} : vector<4x128xf32>, vector<128x8xf32>, vector<4x8xf32> -> vector<4x8xf32>
    %c0_15 = arith.constant 0 : index
    %c0_16 = arith.constant 0 : index
    %17 = vector.load %arg7[%c0_15, %c0_16] : memref<1x8xf32, #tpu.memory_space<vmem>>, vector<1x8xf32>
    %18 = vector.broadcast %17 : vector<1x8xf32> to vector<4x8xf32>
    %19 = arith.addf %16, %18 : vector<4x8xf32>
    %20 = tpu.iota {dimensions = array<i32: 1>} : vector<4x8xi32>
    %c6_i32 = arith.constant 6 : i32
    %21 = vector.broadcast %c6_i32 : i32 to vector<4x8xi32>
    %22 = arith.cmpi slt, %20, %21 : vector<4x8xi32>
    %cst_17 = arith.constant -1.000000e+30 : f32
    %23 = vector.broadcast %cst_17 : f32 to vector<4x8xf32>
    %24 = arith.select %22, %19, %23 : vector<4x8xi1>, vector<4x8xf32>
    %cst_18 = arith.constant dense<0xFF800000> : vector<4xf32>
    %25 = vector.multi_reduction <maximumf>, %24, %cst_18 [1] : vector<4x8xf32> to vector<4xf32>
    %26 = vector.shape_cast %25 : vector<4xf32> to vector<4x1xf32>
    %27 = vector.broadcast %26 : vector<4x1xf32> to vector<4x8xf32>
    %28 = arith.subf %24, %27 : vector<4x8xf32>
    %29 = math.exp %28 : vector<4x8xf32>
    %cst_19 = arith.constant dense<0.000000e+00> : vector<4xf32>
    %30 = vector.multi_reduction <add>, %29, %cst_19 [1] : vector<4x8xf32> to vector<4xf32>
    %31 = vector.shape_cast %30 : vector<4xf32> to vector<4x1xf32>
    %32 = tpu.reciprocal %31 {approx = true} : vector<4x1xf32> -> vector<4x1xf32>
    %33 = arith.mulf %31, %32 : vector<4x1xf32>
    %cst_20 = arith.constant 2.000000e+00 : f32
    %34 = vector.broadcast %cst_20 : f32 to vector<4x1xf32>
    %35 = arith.subf %34, %33 : vector<4x1xf32>
    %36 = arith.mulf %32, %35 : vector<4x1xf32>
    %37 = vector.broadcast %36 : vector<4x1xf32> to vector<4x8xf32>
    %38 = arith.mulf %29, %37 : vector<4x8xf32>
    %39 = arith.select %22, %38, %19 : vector<4x8xi1>, vector<4x8xf32>
    %c0_21 = arith.constant 0 : index
    %c0_22 = arith.constant 0 : index
    %40 = vector.load %arg8[%c0_21, %c0_22] : memref<4x8xf32, #tpu.memory_space<vmem>>, vector<4x8xf32>
    tpu.vector_store %arg8[%c0_21, %c0_22], %39 {strides = array<i32>} : memref<4x8xf32, #tpu.memory_space<vmem>>, vector<4x8xf32>,
    return
  }
  func.func @transform_0(%arg0: i32) -> (i32, i32) {
    %c0_i32 = arith.constant 0 : i32
    %c0_i32_0 = arith.constant 0 : i32
    return %arg0, %c0_i32 : i32, i32
  }
  func.func @transform_1(%arg0: i32) -> (i32, i32) {
    %c0_i32 = arith.constant 0 : i32
    %c0_i32_0 = arith.constant 0 : i32
    %c0_i32_1 = arith.constant 0 : i32
    return %c0_i32, %c0_i32_0 : i32, i32
  }
  func.func @transform_2(%arg0: i32) -> (i32, i32) {
    %c0_i32 = arith.constant 0 : i32
    %c0_i32_0 = arith.constant 0 : i32
    %c0_i32_1 = arith.constant 0 : i32
    return %c0_i32, %c0_i32_0 : i32, i32
  }
  func.func @transform_3(%arg0: i32) -> (i32, i32) {
    %c0_i32 = arith.constant 0 : i32
    %c0_i32_0 = arith.constant 0 : i32
    %c0_i32_1 = arith.constant 0 : i32
    return %c0_i32, %c0_i32_0 : i32, i32
  }
  func.func @transform_4(%arg0: i32) -> (i32, i32) {
    %c0_i32 = arith.constant 0 : i32
    %c0_i32_0 = arith.constant 0 : i32
    %c0_i32_1 = arith.constant 0 : i32
    return %c0_i32, %c0_i32_0 : i32, i32
  }
  func.func @transform_5(%arg0: i32) -> (i32, i32) {
    %c0_i32 = arith.constant 0 : i32
    %c0_i32_0 = arith.constant 0 : i32
    %c0_i32_1 = arith.constant 0 : i32
    return %c0_i32, %c0_i32_0 : i32, i32
  }
  func.func @transform_6(%arg0: i32) -> (i32, i32) {
    %c0_i32 = arith.constant 0 : i32
    %c0_i32_0 = arith.constant 0 : i32
    %c0_i32_1 = arith.constant 0 : i32
    return %c0_i32, %c0_i32_0 : i32, i32
  }
  func.func @transform_7(%arg0: i32) -> (i32, i32) {
    %c0_i32 = arith.constant 0 : i32
    %c0_i32_0 = arith.constant 0 : i32
    return %arg0, %c0_i32 : i32, i32
  }
}

</mosaic_0001>

<llo_original>
// kernel: actor_critic_forward.1
$region0: #{actor_critic_forward.1}
  #allocation0 [shape = 'u32[]', space=smem, size = 0x4, offset = 0x4, fixed_abs, tag = 'smem constant byte address 0x4 - core index']
  #allocation1 [shape = 'u32[144,128]{1,0:T(1,128)}', space=vmem, size = 0x12000, scoped, tag = 'internal scratch']
  %s0 = inlined_call_operand.hbm [shape: f32[4,8], index: 0, kind: input, shape index: {}]
  %s1 = inlined_call_operand.vmem [shape: f32[8,128], index: 1, kind: input, shape index: {}]
  %s2 = inlined_call_operand.vmem [shape: f32[1,128], index: 2, kind: input, shape index: {}]
  %s3 = inlined_call_operand.vmem [shape: f32[128,128], index: 3, kind: input, shape index: {}]
  %s4 = inlined_call_operand.vmem [shape: f32[1,128], index: 4, kind: input, shape index: {}]
  %s5 = inlined_call_operand.vmem [shape: f32[128,8], index: 5, kind: input, shape index: {}]
  %s6 = inlined_call_operand.hbm [shape: f32[1,8], index: 6, kind: input, shape index: {}]
  %s7 = inlined_call_operand.vmem [shape: f32[4,8], index: 7, kind: output, shape index: {}]
  %s8 = sld [smem:[#allocation0]]
  $region46: #{actor_critic_forward.1} parent=0
    _
  %s10 = ssub.s32 1, %s8
  %s11 = scalar_select 0, %s10, %s8
  $region1: #{actor_critic_forward.1} parent=0
    #allocation2 [shape = 'u8[2048]{0}', space=vmem, size = 0x800, scoped, tag = 'input window, operand 0, single buffered']
    #allocation3 [shape = 's32[1]{0}', space=sflag, size = 0x4, scoped, tag = 'scoped memory for actor_critic_forward.1']
    #allocation4 [shape = 'u8[512]{0}', space=vmem, size = 0x400, scoped, tag = 'input window, operand 6, single buffered']
    #allocation5 [shape = 's32[1]{0}', space=sflag, size = 0x4, scoped, tag = 'scoped memory for actor_critic_forward.1']
    %12 = vsyncpa [#allocation3], 0
    %13 = vsyncpa [#allocation5], 0
    // Predicated region
    $region2: #{actor_critic_forward.1} parent=1 // pred_check
      _
    $region3: #{actor_critic_forward.1} parent=1 // pred_check_branch
      %15 = sbr.rel (0) target = $region5
    $region4: #{actor_critic_forward.1} parent=1 // pred_region
      %s17 = ssub.s32 64, 64
      %18 = vsyncadd [#allocation3], %s17
      %s20 = sshll.u32 [#allocation2], 4
      %s21 = int_to_ptr.vmem [resolvable:$true] %s20
      %23 = dma.hbm_to_vmem [thread:$0]  %s0, 64, %s21, [#allocation3]
    $region5: #{actor_critic_forward.1} parent=1 // pred_fallthru
      _
    // Predicated region
    $region6: #{actor_critic_forward.1} parent=1 // pred_check
      _
    $region7: #{actor_critic_forward.1} parent=1 // pred_check_branch
      %25 = sbr.rel (0) target = $region9
    $region8: #{actor_critic_forward.1} parent=1 // pred_region
      _
    $region9: #{actor_critic_forward.1} parent=1 // pred_fallthru
      _
    // Predicated region
    $region10: #{actor_critic_forward.1} parent=1 // pred_check
      _
    $region11: #{actor_critic_forward.1} parent=1 // pred_check_branch
      %27 = sbr.rel (0) target = $region13
    $region12: #{actor_critic_forward.1} parent=1 // pred_region
      _
    $region13: #{actor_critic_forward.1} parent=1 // pred_fallthru
      _
    // Predicated region
    $region14: #{actor_critic_forward.1} parent=1 // pred_check
      _
    $region15: #{actor_critic_forward.1} parent=1 // pred_check_branch
      %29 = sbr.rel (0) target = $region17
    $region16: #{actor_critic_forward.1} parent=1 // pred_region
      _
    $region17: #{actor_critic_forward.1} parent=1 // pred_fallthru
      _
    // Predicated region
    $region18: #{actor_critic_forward.1} parent=1 // pred_check
      _
    $region19: #{actor_critic_forward.1} parent=1 // pred_check_branch
      %31 = sbr.rel (0) target = $region21
    $region20: #{actor_critic_forward.1} parent=1 // pred_region
      _
    $region21: #{actor_critic_forward.1} parent=1 // pred_fallthru
      _
    // Predicated region
    $region22: #{actor_critic_forward.1} parent=1 // pred_check
      _
    $region23: #{actor_critic_forward.1} parent=1 // pred_check_branch
      %33 = sbr.rel (0) target = $region25
    $region24: #{actor_critic_forward.1} parent=1 // pred_region
      _
    $region25: #{actor_critic_forward.1} parent=1 // pred_fallthru
      _
    // Predicated region
    $region26: #{actor_critic_forward.1} parent=1 // pred_check
      _
    $region27: #{actor_critic_forward.1} parent=1 // pred_check_branch
      %35 = sbr.rel (0) target = $region29
    $region28: #{actor_critic_forward.1} parent=1 // pred_region
      %s37 = ssub.s32 16, 16
      %38 = vsyncadd [#allocation5], %s37
      %s40 = sshll.u32 [#allocation4], 4
      %s41 = int_to_ptr.vmem [resolvable:$true] %s40
      %43 = dma.hbm_to_vmem [thread:$0]  %s6, 16, %s41, [#allocation5]
    $region29: #{actor_critic_forward.1} parent=1 // pred_fallthru
      _
    // Predicated region
    $region30: #{actor_critic_forward.1} parent=1 // pred_check
      _
    $region31: #{actor_critic_forward.1} parent=1 // pred_check_branch
      %45 = sbr.rel (0) target = $region33
    $region32: #{actor_critic_forward.1} parent=1 // pred_region
      %46 = dma.done [#allocation3], 64
    $region33: #{actor_critic_forward.1} parent=1 // pred_fallthru
      _
    // Predicated region
    $region34: #{actor_critic_forward.1} parent=1 // pred_check
      _
    $region35: #{actor_critic_forward.1} parent=1 // pred_check_branch
      %48 = sbr.rel (0) target = $region37
    $region36: #{actor_critic_forward.1} parent=1 // pred_region
      %49 = dma.done [#allocation5], 16
    $region37: #{actor_critic_forward.1} parent=1 // pred_fallthru
      _
    %v50 = vld [vmem:[#allocation2] sm:$0xf]
    %v51 = vld [vmem:[%s1] sm:$0xff]
    %v52 = vld [vmem:[%s2] sm:$0x1]
    %v54 = vlaneseq
    %v55 = vshrl.u32 %v54, 7
    %v56 = vsub.s32 0, %v55
    %v57 = vrot.slane %v52, %v56
    %vm59 = vcmask 64512
    %v61 = vsel %vm59, %v50, 0
    %63 = vmatprep.subr.mxu0 0.0
    %64 = vmatpush1.msra.mxu0 0.0
    %65 = vmatprep.subr.mxu0 0.0
    %66 = vmatpush1.msra.mxu0 0.0
    %67 = vmatprep.subr.mxu0 0.0
    %68 = vmatpush1.msra.mxu0 0.0
    %69 = vmatprep.subr.mxu0 0.0
    %70 = vmatpush1.msra.mxu0 0.0
    %71 = vmatprep.subr.mxu0 0.0
    %72 = vmatpush1.msra.mxu0 0.0
    %73 = vmatprep.subr.mxu0 0.0
    %74 = vmatpush1.msra.mxu0 0.0
    %75 = vmatprep.subr.mxu0 0.0
    %76 = vmatpush1.msra.mxu0 0.0
    %77 = vmatprep.subr.mxu0 0.0
    %78 = vmatpush1.msra.mxu0 0.0
    %79 = vmatprep.subr.mxu0 0.0
    %80 = vmatpush1.msra.mxu0 0.0
    %81 = vmatprep.subr.mxu0 0.0
    %82 = vmatpush1.msra.mxu0 0.0
    %83 = vmatprep.subr.mxu0 0.0
    %84 = vmatpush1.msra.mxu0 0.0
    %85 = vmatprep.subr.mxu0 0.0
    %86 = vmatpush1.msra.mxu0 0.0
    %87 = vmatprep.subr.mxu0 0.0
    %88 = vmatpush1.msra.mxu0 0.0
    %89 = vmatprep.subr.mxu0 0.0
    %90 = vmatpush1.msra.mxu0 0.0
    %91 = vmatprep.subr.mxu0 0.0
    %92 = vmatpush1.msra.mxu0 0.0
    %93 = vmatprep.subr.mxu0 0.0
    %94 = vmatpush1.msra.mxu0 %v51
    %95 = vmatprep.subr.mxu0 0.0
    %96 = vmatpush2.msra.mxu0 0.0
    %97 = vmatprep.subr.mxu0 0.0
    %98 = vmatpush2.msra.mxu0 0.0
    %99 = vmatprep.subr.mxu0 0.0
    %100 = vmatpush2.msra.mxu0 0.0
    %101 = vmatprep.subr.mxu0 0.0
    %102 = vmatpush2.msra.mxu0 0.0
    %103 = vmatprep.subr.mxu0 0.0
    %104 = vmatpush2.msra.mxu0 0.0
    %105 = vmatprep.subr.mxu0 0.0
    %106 = vmatpush2.msra.mxu0 0.0
    %107 = vmatprep.subr.mxu0 0.0
    %108 = vmatpush2.msra.mxu0 0.0
    %109 = vmatprep.subr.mxu0 0.0
    %110 = vmatpush2.msra.mxu0 0.0
    %111 = vmatprep.subr.mxu0 0.0
    %112 = vmatpush2.msra.mxu0 0.0
    %113 = vmatprep.subr.mxu0 0.0
    %114 = vmatpush2.msra.mxu0 0.0
    %115 = vmatprep.subr.mxu0 0.0
    %116 = vmatpush2.msra.mxu0 0.0
    %117 = vmatprep.subr.mxu0 0.0
    %118 = vmatpush2.msra.mxu0 0.0
    %119 = vmatprep.subr.mxu0 0.0
    %120 = vmatpush2.msra.mxu0 0.0
    %121 = vmatprep.subr.mxu0 0.0
    %122 = vmatpush2.msra.mxu0 0.0
    %123 = vmatprep.subr.mxu0 0.0
    %124 = vmatpush2.msra.mxu0 0.0
    %125 = vmatprep.subr.mxu0 0.0
    %126 = vmatpush2.msra.mxu0 0.0
    %127 = vmatprep.mubr.f32.mxu0 0.0
    %128 = vmatmul.mubr.f32.gmra.mxu0 %v61
    %v129 = vpop.f32.mrf.mxu0
    %v130 = vadd.f32 %v57, %v129
    %v131 = vpop.f32.mrf.mxu0
    %132 = vdwg.mxu0
    %v133 = vmax.f32 %v130, 0.0
    %v134 = vld [vmem:[%s3] sm:$0xff]
    %v135 = vld [vmem:[%s3 + $0x8] sm:$0xff]
    %v136 = vld [vmem:[%s3 + $0x10] sm:$0xff]
    %v137 = vld [vmem:[%s3 + $0x18] sm:$0xff]
    %v138 = vld [vmem:[%s3 + $0x20] sm:$0xff]
    %v139 = vld [vmem:[%s3 + $0x28] sm:$0xff]
    %v140 = vld [vmem:[%s3 + $0x30] sm:$0xff]
    %v141 = vld [vmem:[%s3 + $0x38] sm:$0xff]
    %v142 = vld [vmem:[%s3 + $0x40] sm:$0xff]
    %v143 = vld [vmem:[%s3 + $0x48] sm:$0xff]
    %v144 = vld [vmem:[%s3 + $0x50] sm:$0xff]
    %v145 = vld [vmem:[%s3 + $0x58] sm:$0xff]
    %v146 = vld [vmem:[%s3 + $0x60] sm:$0xff]
    %v147 = vld [vmem:[%s3 + $0x68] sm:$0xff]
    %v148 = vld [vmem:[%s3 + $0x70] sm:$0xff]
    %v149 = vld [vmem:[%s3 + $0x78] sm:$0xff]
    %v150 = vld [vmem:[%s4] sm:$0x1]
    %v152 = vlaneseq
    %v153 = vshrl.u32 %v152, 7
    %v154 = vsub.s32 0, %v153
    %v155 = vrot.slane %v150, %v154
    %157 = vmatprep.subr.mxu0 0.0
    %158 = vmatpush1.msra.mxu0 %v149
    %159 = vmatprep.subr.mxu0 0.0
    %160 = vmatpush1.msra.mxu0 %v148
    %161 = vmatprep.subr.mxu0 0.0
    %162 = vmatpush1.msra.mxu0 %v147
    %163 = vmatprep.subr.mxu0 0.0
    %164 = vmatpush1.msra.mxu0 %v146
    %165 = vmatprep.subr.mxu0 0.0
    %166 = vmatpush1.msra.mxu0 %v145
    %167 = vmatprep.subr.mxu0 0.0
    %168 = vmatpush1.msra.mxu0 %v144
    %169 = vmatprep.subr.mxu0 0.0
    %170 = vmatpush1.msra.mxu0 %v143
    %171 = vmatprep.subr.mxu0 0.0
    %172 = vmatpush1.msra.mxu0 %v142
    %173 = vmatprep.subr.mxu0 0.0
    %174 = vmatpush1.msra.mxu0 %v141
    %175 = vmatprep.subr.mxu0 0.0
    %176 = vmatpush1.msra.mxu0 %v140
    %177 = vmatprep.subr.mxu0 0.0
    %178 = vmatpush1.msra.mxu0 %v139
    %179 = vmatprep.subr.mxu0 0.0
    %180 = vmatpush1.msra.mxu0 %v138
    %181 = vmatprep.subr.mxu0 0.0
    %182 = vmatpush1.msra.mxu0 %v137
    %183 = vmatprep.subr.mxu0 0.0
    %184 = vmatpush1.msra.mxu0 %v136
    %185 = vmatprep.subr.mxu0 0.0
    %186 = vmatpush1.msra.mxu0 %v135
    %187 = vmatprep.subr.mxu0 0.0
    %188 = vmatpush1.msra.mxu0 %v134
    %189 = vmatprep.subr.mxu0 0.0
    %190 = vmatpush2.msra.mxu0 0.0
    %191 = vmatprep.subr.mxu0 0.0
    %192 = vmatpush2.msra.mxu0 0.0
    %193 = vmatprep.subr.mxu0 0.0
    %194 = vmatpush2.msra.mxu0 0.0
    %195 = vmatprep.subr.mxu0 0.0
    %196 = vmatpush2.msra.mxu0 0.0
    %197 = vmatprep.subr.mxu0 0.0
    %198 = vmatpush2.msra.mxu0 0.0
    %199 = vmatprep.subr.mxu0 0.0
    %200 = vmatpush2.msra.mxu0 0.0
    %201 = vmatprep.subr.mxu0 0.0
    %202 = vmatpush2.msra.mxu0 0.0
    %203 = vmatprep.subr.mxu0 0.0
    %204 = vmatpush2.msra.mxu0 0.0
    %205 = vmatprep.subr.mxu0 0.0
    %206 = vmatpush2.msra.mxu0 0.0
    %207 = vmatprep.subr.mxu0 0.0
    %208 = vmatpush2.msra.mxu0 0.0
    %209 = vmatprep.subr.mxu0 0.0
    %210 = vmatpush2.msra.mxu0 0.0
    %211 = vmatprep.subr.mxu0 0.0
    %212 = vmatpush2.msra.mxu0 0.0
    %213 = vmatprep.subr.mxu0 0.0
    %214 = vmatpush2.msra.mxu0 0.0
    %215 = vmatprep.subr.mxu0 0.0
    %216 = vmatpush2.msra.mxu0 0.0
    %217 = vmatprep.subr.mxu0 0.0
    %218 = vmatpush2.msra.mxu0 0.0
    %219 = vmatprep.subr.mxu0 0.0
    %220 = vmatpush2.msra.mxu0 0.0
    %221 = vmatprep.mubr.f32.mxu0 0.0
    %222 = vmatmul.mubr.f32.gmra.mxu0 %v133
    %v223 = vpop.f32.mrf.mxu0
    %v224 = vadd.f32 %v155, %v223
    %v225 = vpop.f32.mrf.mxu0
    %226 = vdwg.mxu0
    %v227 = vmax.f32 %v224, 0.0
    %v228 = vld [vmem:[%s5] sm:$0xff]
    %v229 = vld [vmem:[%s5 + $0x8] sm:$0xff]
    %v230 = vld [vmem:[%s5 + $0x10] sm:$0xff]
    %v231 = vld [vmem:[%s5 + $0x18] sm:$0xff]
    %v232 = vld [vmem:[%s5 + $0x20] sm:$0xff]
    %v233 = vld [vmem:[%s5 + $0x28] sm:$0xff]
    %v234 = vld [vmem:[%s5 + $0x30] sm:$0xff]
    %v235 = vld [vmem:[%s5 + $0x38] sm:$0xff]
    %v236 = vld [vmem:[%s5 + $0x40] sm:$0xff]
    %v237 = vld [vmem:[%s5 + $0x48] sm:$0xff]
    %v238 = vld [vmem:[%s5 + $0x50] sm:$0xff]
    %v239 = vld [vmem:[%s5 + $0x58] sm:$0xff]
    %v240 = vld [vmem:[%s5 + $0x60] sm:$0xff]
    %v241 = vld [vmem:[%s5 + $0x68] sm:$0xff]
    %v242 = vld [vmem:[%s5 + $0x70] sm:$0xff]
    %v243 = vld [vmem:[%s5 + $0x78] sm:$0xff]
    %v244 = vld [vmem:[#allocation4] sm:$0x1]
    %v246 = vlaneseq
    %v247 = vshrl.u32 %v246, 7
    %v248 = vsub.s32 0, %v247
    %v249 = vrot.slane %v244, %v248
    %251 = vmatprep.subr.mxu0 0.0
    %252 = vmatpush1.msra.mxu0 %v243
    %253 = vmatprep.subr.mxu0 0.0
    %254 = vmatpush1.msra.mxu0 %v242
    %255 = vmatprep.subr.mxu0 0.0
    %256 = vmatpush1.msra.mxu0 %v241
    %257 = vmatprep.subr.mxu0 0.0
    %258 = vmatpush1.msra.mxu0 %v240
    %259 = vmatprep.subr.mxu0 0.0
    %260 = vmatpush1.msra.mxu0 %v239
    %261 = vmatprep.subr.mxu0 0.0
    %262 = vmatpush1.msra.mxu0 %v238
    %263 = vmatprep.subr.mxu0 0.0
    %264 = vmatpush1.msra.mxu0 %v237
    %265 = vmatprep.subr.mxu0 0.0
    %266 = vmatpush1.msra.mxu0 %v236
    %267 = vmatprep.subr.mxu0 0.0
    %268 = vmatpush1.msra.mxu0 %v235
    %269 = vmatprep.subr.mxu0 0.0
    %270 = vmatpush1.msra.mxu0 %v234
    %271 = vmatprep.subr.mxu0 0.0
    %272 = vmatpush1.msra.mxu0 %v233
    %273 = vmatprep.subr.mxu0 0.0
    %274 = vmatpush1.msra.mxu0 %v232
    %275 = vmatprep.subr.mxu0 0.0
    %276 = vmatpush1.msra.mxu0 %v231
    %277 = vmatprep.subr.mxu0 0.0
    %278 = vmatpush1.msra.mxu0 %v230
    %279 = vmatprep.subr.mxu0 0.0
    %280 = vmatpush1.msra.mxu0 %v229
    %281 = vmatprep.subr.mxu0 0.0
    %282 = vmatpush1.msra.mxu0 %v228
    %283 = vmatprep.subr.mxu0 0.0
    %284 = vmatpush2.msra.mxu0 0.0
    %285 = vmatprep.subr.mxu0 0.0
    %286 = vmatpush2.msra.mxu0 0.0
    %287 = vmatprep.subr.mxu0 0.0
    %288 = vmatpush2.msra.mxu0 0.0
    %289 = vmatprep.subr.mxu0 0.0
    %290 = vmatpush2.msra.mxu0 0.0
    %291 = vmatprep.subr.mxu0 0.0
    %292 = vmatpush2.msra.mxu0 0.0
    %293 = vmatprep.subr.mxu0 0.0
    %294 = vmatpush2.msra.mxu0 0.0
    %295 = vmatprep.subr.mxu0 0.0
    %296 = vmatpush2.msra.mxu0 0.0
    %297 = vmatprep.subr.mxu0 0.0
    %298 = vmatpush2.msra.mxu0 0.0
    %299 = vmatprep.subr.mxu0 0.0
    %300 = vmatpush2.msra.mxu0 0.0
    %301 = vmatprep.subr.mxu0 0.0
    %302 = vmatpush2.msra.mxu0 0.0
    %303 = vmatprep.subr.mxu0 0.0
    %304 = vmatpush2.msra.mxu0 0.0
    %305 = vmatprep.subr.mxu0 0.0
    %306 = vmatpush2.msra.mxu0 0.0
    %307 = vmatprep.subr.mxu0 0.0
    %308 = vmatpush2.msra.mxu0 0.0
    %309 = vmatprep.subr.mxu0 0.0
    %310 = vmatpush2.msra.mxu0 0.0
    %311 = vmatprep.subr.mxu0 0.0
    %312 = vmatpush2.msra.mxu0 0.0
    %313 = vmatprep.subr.mxu0 0.0
    %314 = vmatpush2.msra.mxu0 0.0
    %315 = vmatprep.mubr.f32.mxu0 0.0
    %316 = vmatmul.mubr.f32.gmra.mxu0 %v227
    %v317 = vpop.f32.mrf.mxu0
    %v318 = vadd.f32 %v249, %v317
    %v319 = vpop.f32.mrf.mxu0
    %320 = vdwg.mxu0
    %v321 = vlaneseq
    %v322 = vand.u32 %v321, 127
    %vm323 = vcmp.lt.s32.totalorder %v322, 6
    %v324 = vsel %vm323, %v318, -1e+30
    %vm325 = vcmask 60416
    %v326 = vsel %vm325, %v324, -inf
    %327 = vmax.xlane.f32.xlu0 %v326
    %v328 = vpop.xlane.xlu0 %327
    %v329 = vsub.f32 %v324, %v328
    %v330 = vmul.f32 %v329, 1.442695
    %v331 = vpow.pop %v330
    %v332 = vsel %vm325, %v331, 0.0
    %333 = vadd.xlane.f32.xlu0 %v332
    %v334 = vpop.xlane.xlu0 %333
    %v335 = vrcp.pop %v334
    %v336 = vmul.f32 %v334, %v335
    %v337 = vsub.f32 2.0, %v336
    %v338 = vmul.f32 %v335, %v337
    %v339 = vmul.f32 %v331, %v338
    %v340 = vsel %vm323, %v339, %v318
    %341 = vst.msk [vmem:[%s7] sm:$0xf] %vm325, %v340
    // Predicated region
    $region38: #{actor_critic_forward.1} parent=1 // pred_check
      _
    $region39: #{actor_critic_forward.1} parent=1 // pred_check_branch
      %343 = sbr.rel (0) target = $region41
    $region40: #{actor_critic_forward.1} parent=1 // pred_region
      _
    $region41: #{actor_critic_forward.1} parent=1 // pred_fallthru
      _
    // Predicated region
    $region42: #{actor_critic_forward.1} parent=1 // pred_check
      _
    $region43: #{actor_critic_forward.1} parent=1 // pred_check_branch
      %345 = sbr.rel (0) target = $region45
    $region44: #{actor_critic_forward.1} parent=1 // pred_region
      _
    $region45: #{actor_critic_forward.1} parent=1 // pred_fallthru
      _
    %346 = vsyncpa [#allocation3], 1
    %347 = vsyncpa [#allocation5], 1

</llo_original>
